<compile_context>
chip_gen: v6e
topology: v6e:2x2x1
jax: 0.10.0
libtpu: 0.0.40
codegen_flags: <defaults>
</compile_context>

<pallas_src>
import functools

import jax
import jax.numpy as jnp
from jax.experimental import pallas as pl
from jax.experimental.pallas import tpu as pltpu

_LANES = 128


# --------------------------------------------------------------------------
# Kernel
# --------------------------------------------------------------------------
def _make_scale_kernel(compute_in_f32: bool):
    def kernel(scale_ref, x_ref, o_ref):
        # scale_ref: (1, 1) f32 scalar in SMEM; x_ref/o_ref: (tile_rows, 128).
        s = scale_ref[0, 0]
        if compute_in_f32:
            y = x_ref[...].astype(jnp.float32) * s
            if jnp.issubdtype(o_ref.dtype, jnp.integer):
                # Round-to-nearest for integer outputs instead of truncation.
                y = jnp.round(y)
            o_ref[...] = y.astype(o_ref.dtype)
        else:
            # Native-dtype multiply (bf16/f16 on v6e/v7x): halves vreg/vld/vst
            # pressure; single rounding of the scale outside the data path.
            o_ref[...] = x_ref[...] * s.astype(o_ref.dtype)

    return kernel


# --------------------------------------------------------------------------
# Device-aware tiling policy
# --------------------------------------------------------------------------
@functools.lru_cache(maxsize=None)
def _tpu_generation() -> int:
    try:
        kind = jax.devices()[0].device_kind.lower()
    except Exception:
        return 6
    for gen in (7, 6, 5, 4):
        if f"v{gen}" in kind or f"tpu{gen}" in kind:
            return gen
    return 6


def _block_policy(gen: int):
    """-> (target_block_bytes, min_grid_steps, vmem_limit_bytes or None)."""
    if gen >= 7:
        # v7x: 2 TCs, 3.2 TB/s HBM, 64 MiB physical VMEM per TC.
        return 8 << 20, 2, 48 << 20
    # v5e/v6e: single TC; 2 MiB blocks fit the default scoped-VMEM limit
    # (16 / 32 MiB) with double-buffered in+out and sit near the HBM roofline.
    return 2 << 20, 1, None


def _sublane_multiple(dtype) -> int:
    itemsize = jnp.dtype(dtype).itemsize
    return {4: 8, 2: 16, 1: 32}.get(itemsize, 8)


def _choose_tile_rows(rows: int, dtype, *, target_block_bytes: int,
                      min_grid_steps: int) -> int:
    itemsize = jnp.dtype(dtype).itemsize
    sub = _sublane_multiple(dtype)
    if rows <= sub:
        return rows  # single full-array block (block_shape == array dims)
    # Rows per block for the byte budget.
    t = max(sub, target_block_bytes // (_LANES * itemsize))
    # Optional grid-step floor (only meaningful on multi-TC parts).
    t = min(t, max(sub, pl.cdiv(rows, max(1, min_grid_steps))))
    # Round down to the dtype's sublane multiple.
    t = max(sub, (t // sub) * sub)
    return int(t)


# --------------------------------------------------------------------------
# Wrapper (ScaleLayer.forward)
# --------------------------------------------------------------------------
def scale_layer(x: jax.Array, scale: jax.Array, *,
                min_pallas_bytes: int = 1 << 20,
                donate_input: bool = False) -> jax.Array:
    """x * scale (scale is a single learned f32 scalar), matching PyTorch
    ScaleLayer.forward semantics. Output dtype == x.dtype."""
    orig_shape = x.shape
    orig_dtype = x.dtype
    n = int(x.size)
    itemsize = jnp.dtype(orig_dtype).itemsize

    scale_f32 = jnp.asarray(scale, dtype=jnp.float32).reshape(())

    # Plain fused XLA multiply is already a single read+write HBM pass; use it
    # when a pallas_call would only add launch overhead (tiny tensors) or
    # extra pad/slice passes (numel not a multiple of 128).
    if n == 0 or n * itemsize < min_pallas_bytes or n % _LANES != 0:
        return (x.astype(jnp.float32) * scale_f32).astype(orig_dtype)

    rows = n // _LANES
    x2d = x.reshape(rows, _LANES)

    gen = _tpu_generation()
    block_bytes, min_steps, vmem_limit = _block_policy(gen)
    tile_rows = _choose_tile_rows(rows, orig_dtype,
                                  target_block_bytes=block_bytes,
                                  min_grid_steps=min_steps)

    is_half = jnp.dtype(orig_dtype) in (jnp.dtype(jnp.bfloat16),
                                        jnp.dtype(jnp.float16))
    compute_in_f32 = not (is_half and gen >= 6)  # v5e has no bf16 VALU

    compiler_kwargs = dict(dimension_semantics=("parallel",))
    if vmem_limit is not None:
        compiler_kwargs["vmem_limit_bytes"] = vmem_limit

    out = pl.pallas_call(
        _make_scale_kernel(compute_in_f32),
        out_shape=jax.ShapeDtypeStruct((rows, _LANES), orig_dtype),
        grid_spec=pl.GridSpec(
            grid=(pl.cdiv(rows, tile_rows),),
            in_specs=[
                pl.BlockSpec(memory_space=pltpu.SMEM),               # scale
                pl.BlockSpec((tile_rows, _LANES), lambda i: (i, 0)),  # x
            ],
            out_specs=pl.BlockSpec((tile_rows, _LANES), lambda i: (i, 0)),
        ),
        compiler_params=pltpu.CompilerParams(**compiler_kwargs),
        cost_estimate=pl.CostEstimate(
            flops=n, transcendentals=0, bytes_accessed=2 * n * itemsize),
        # Shape/dtype-preserving op: allow the output to reuse x's HBM buffer
        # when the caller donates x (XLA inserts a defensive copy otherwise).
        input_output_aliases=({1: 0} if donate_input else {}),
    )(scale_f32.reshape(1, 1), x2d)

    return out.reshape(orig_shape)


# --------------------------------------------------------------------------
# Demo / self-test
# --------------------------------------------------------------------------
if __name__ == "__main__":
    key = jax.random.PRNGKey(0)
    k1, k2, k3, k4 = jax.random.split(key, 4)

    # Matches nn.Parameter(torch.FloatTensor([0.001])).
    scale = jnp.array([0.001], dtype=jnp.float32)

    # 1) Pallas path on a small NCHW activation (numel = 2048 = 16 rows * 128).
    x1 = jax.random.normal(k1, (2, 4, 16, 16), dtype=jnp.float32)
    y1 = jax.block_until_ready(scale_layer(x1, scale, min_pallas_bytes=0))
    assert y1.shape == x1.shape and y1.dtype == x1.dtype
    assert jnp.allclose(y1, x1 * scale[0], atol=1e-6, rtol=1e-6)

    # 2) Small-tensor fallback (default threshold): plain fused XLA multiply.
    y1b = jax.block_until_ready(scale_layer(x1, scale))
    assert jnp.allclose(y1b, x1 * scale[0], atol=1e-6, rtol=1e-6)

    # 3) Ragged last block (rows=12 not a multiple of tile_rows) + aliased output.
    x2 = jax.random.normal(k2, (2, 3, 16, 16), dtype=jnp.float32)
    y2 = jax.block_until_ready(
        scale_layer(x2, scale, min_pallas_bytes=0, donate_input=True))
    assert jnp.allclose(y2, x2 * scale[0], atol=1e-6, rtol=1e-6)

    # 4) numel % 128 != 0 -> single-pass XLA path (no pad/slice wrapper).
    x3 = jax.random.normal(k3, (2, 5, 7, 7), dtype=jnp.float32)
    y3 = jax.block_until_ready(scale_layer(x3, scale))
    assert y3.shape == x3.shape and y3.dtype == x3.dtype
    assert jnp.allclose(y3, x3 * scale[0], atol=1e-6, rtol=1e-6)

    # 5) bf16 activations (native-dtype multiply on v6e/v7x, f32 upcast on v5e).
    x4 = jax.random.normal(k4, (2, 4, 16, 16), dtype=jnp.float32).astype(jnp.bfloat16)
    y4 = jax.block_until_ready(scale_layer(x4, scale, min_pallas_bytes=0))
    ref4 = (x4.astype(jnp.float32) * scale[0]).astype(jnp.bfloat16)
    assert y4.shape == x4.shape and y4.dtype == jnp.bfloat16
    assert jnp.allclose(y4.astype(jnp.float32), ref4.astype(jnp.float32),
                        atol=1e-2, rtol=1e-2)

    print("KERNEL_OK")
</pallas_src>

<mosaic_0001>
module attributes {stable_mosaic.version = 11 : i64} {
  func.func @kernel(%arg0: i32, %arg1: memref<1x1xf32, #tpu.memory_space<smem>>, %arg2: memref<16x128xf32, #tpu.memory_space<vmem>>, %arg3: memref<16x128xf32, #tpu.memory_space<vmem>>) attributes {dimension_semantics = [#tpu.dimension_semantics<parallel>], iteration_bounds = array<i64: 1>, scalar_prefetch = 0 : i64, scratch_operands = 0 : i64, tpu.core_type = #tpu.core_type<tc>, window_params = [{transform_indices = @transform_0, window_bounds = array<i64: 1, 1>}, {transform_indices = @transform_1, window_bounds = array<i64: 16, 128>}, {transform_indices = @transform_2, window_bounds = array<i64: 16, 128>}]} {
    %c0 = arith.constant 0 : index
    %c0_0 = arith.constant 0 : index
    %0 = memref.load %arg1[%c0, %c0_0] : memref<1x1xf32, #tpu.memory_space<smem>>
    %c0_1 = arith.constant 0 : index
    %c0_2 = arith.constant 0 : index
    %1 = vector.load %arg2[%c0_1, %c0_2] : memref<16x128xf32, #tpu.memory_space<vmem>>, vector<16x128xf32>
    %2 = vector.broadcast %0 : f32 to vector<16x128xf32>
    %3 = arith.mulf %1, %2 : vector<16x128xf32>
    %c0_3 = arith.constant 0 : index
    %c0_4 = arith.constant 0 : index
    %4 = vector.load %arg3[%c0_3, %c0_4] : memref<16x128xf32, #tpu.memory_space<vmem>>, vector<16x128xf32>
    tpu.vector_store %arg3[%c0_3, %c0_4], %3 {strides = array<i32>} : memref<16x128xf32, #tpu.memory_space<vmem>>, vector<16x128xf32>,
    return
  }
  func.func @transform_0(%arg0: i32) -> (i32, i32) {
    %c0_i32 = arith.constant 0 : i32
    %c0_i32_0 = arith.constant 0 : i32
    %c0_i32_1 = arith.constant 0 : i32
    return %c0_i32, %c0_i32_0 : i32, i32
  }
  func.func @transform_1(%arg0: i32) -> (i32, i32) {
    %c0_i32 = arith.constant 0 : i32
    %c0_i32_0 = arith.constant 0 : i32
    return %arg0, %c0_i32 : i32, i32
  }
  func.func @transform_2(%arg0: i32) -> (i32, i32) {
    %c0_i32 = arith.constant 0 : i32
    %c0_i32_0 = arith.constant 0 : i32
    return %arg0, %c0_i32 : i32, i32
  }
}

</mosaic_0001>

<llo_original>
// kernel: tpu_custom_call.1
$region0: #{tpu_custom_call.1}
  #allocation0 [shape = 'u32[]', space=smem, size = 0x4, offset = 0x4, fixed_abs, tag = 'smem constant byte address 0x4 - core index']
  #allocation1 [shape = 'u32[144,128]{1,0:T(1,128)}', space=vmem, size = 0x12000, scoped, tag = 'internal scratch']
  #allocation2 [shape = 'f32[1,1]{1,0:T(1,128)S(6)}', space=smem, size = 0x200, scoped, tag = 'scoped memory for tpu_custom_call.1']
  %s0 = inlined_call_operand.<no memory space> [shape: f32[1,1], index: 0, kind: input, shape index: {}]
  %s1 = inlined_call_operand.hbm [shape: f32[16,128], index: 1, kind: input, shape index: {}]
  %s2 = inlined_call_operand.hbm [shape: f32[16,128], index: 2, kind: output, shape index: {}]
  %s3 = sld [smem:[#allocation0]]
  $region22: #{tpu_custom_call.1} parent=0
    _
  %s5 = ssub.s32 1, %s3
  %s6 = scalar_select 0, %s5, %s3
  %7 = sst [smem:[#allocation2]] %s0
  $region1: #{tpu_custom_call.1} parent=0
    #allocation3 [shape = 'u8[8192]{0}', space=vmem, size = 0x2000, scoped, tag = 'input window, operand 1, single buffered']
    #allocation4 [shape = 's32[1]{0}', space=sflag, size = 0x4, scoped, tag = 'scoped memory for tpu_custom_call.1']
    #allocation5 [shape = 's32[1]{0}', space=sflag, size = 0x4, scoped, tag = 'scoped memory for tpu_custom_call.1']
    #allocation6 [shape = 'u8[8192]{0}', space=vmem, size = 0x2000, scoped, tag = 'output window, operand 0, single buffered']
    %8 = vsyncpa [#allocation4], 0
    %9 = vsyncpa [#allocation5], 0
    // Predicated region
    $region2: #{tpu_custom_call.1} parent=1 // pred_check
      _
    $region3: #{tpu_custom_call.1} parent=1 // pred_check_branch
      %11 = sbr.rel (0) target = $region5
    $region4: #{tpu_custom_call.1} parent=1 // pred_region
      _
    $region5: #{tpu_custom_call.1} parent=1 // pred_fallthru
      _
    // Predicated region
    $region6: #{tpu_custom_call.1} parent=1 // pred_check
      _
    $region7: #{tpu_custom_call.1} parent=1 // pred_check_branch
      %13 = sbr.rel (0) target = $region9
    $region8: #{tpu_custom_call.1} parent=1 // pred_region
      %s15 = ssub.s32 256, 256
      %16 = vsyncadd [#allocation4], %s15
      %s17 = sshll.u32 [#allocation3], 4
      %s18 = int_to_ptr.vmem [resolvable:$true] %s17
      %23 = dma.hbm_to_vmem [thread:$0]  %s1, 256, %s18, [#allocation4], 128, 128, 8
    $region9: #{tpu_custom_call.1} parent=1 // pred_fallthru
      _
    // Predicated region
    $region10: #{tpu_custom_call.1} parent=1 // pred_check
      _
    $region11: #{tpu_custom_call.1} parent=1 // pred_check_branch
      %25 = sbr.rel (0) target = $region13
    $region12: #{tpu_custom_call.1} parent=1 // pred_region
      %26 = dma.done [#allocation4], 256
    $region13: #{tpu_custom_call.1} parent=1 // pred_fallthru
      _
    %s27 = sld [smem:[#allocation2]]
    %v28 = vld [vmem:[#allocation3] sm:$0xff]
    %v29 = vld [vmem:[#allocation3 + $0x8] sm:$0xff]
    %v30 = vstv %s27
    %v31 = vmul.f32 %v28, %v30
    %v32 = vmul.f32 %v29, %v30
    %33 = vst [vmem:[#allocation6] sm:$0xff] %v31
    %34 = vst [vmem:[#allocation6 + $0x8] sm:$0xff] %v32
    // Predicated region
    $region14: #{tpu_custom_call.1} parent=1 // pred_check
      _
    $region15: #{tpu_custom_call.1} parent=1 // pred_check_branch
      %36 = sbr.rel (0) target = $region17
    $region16: #{tpu_custom_call.1} parent=1 // pred_region
      %s38 = ssub.s32 256, 256
      %39 = vsyncadd [#allocation5], %s38
      %s40 = sshll.u32 [#allocation6], 4
      %s41 = int_to_ptr.vmem [resolvable:$true] %s40
      %46 = dma.vmem_to_hbm [thread:$0]  %s41, 256, %s2, [#allocation5], 128, 128, 8
    $region17: #{tpu_custom_call.1} parent=1 // pred_fallthru
      _
    // Predicated region
    $region18: #{tpu_custom_call.1} parent=1 // pred_check
      _
    $region19: #{tpu_custom_call.1} parent=1 // pred_check_branch
      %48 = sbr.rel (0) target = $region21
    $region20: #{tpu_custom_call.1} parent=1 // pred_region
      %49 = dma.done [#allocation5], 256
    $region21: #{tpu_custom_call.1} parent=1 // pred_fallthru
      _
    %50 = vsyncpa [#allocation4], 1
    %51 = vsyncpa [#allocation5], 1

</llo_original>
